<compile_context>
chip_gen: v6e
topology: v6e:2x2x1
jax: 0.10.0
libtpu: 0.0.40
codegen_flags: <defaults>
</compile_context>

<pallas_src>
import functools

import jax
import jax.numpy as jnp
from jax import lax
from jax.experimental import pallas as pl
from jax.experimental.pallas import tpu as pltpu

HIDDEN = 128
N_LAYERS = 3
IN_DIM = 4
OUT_DIM = 2

DEFAULT_TILE_B = 16384   # batch rows per grid step (review: 8K-32K)
SUB_TILE = 256           # in-kernel row sub-block (sweep {128,256,512} per chip)
UNROLL = 4               # sub-block loop unroll depth (2-4; full unroll spills)


def _default_tanh_dtype():
    """bf16 tanh on chips with a bf16 EUP (v6e/v7x); f32 on v5e and older."""
    try:
        kind = jax.devices()[0].device_kind.lower()
    except Exception:
        return jnp.bfloat16
    for tag in ("v2", "v3", "v4", "v5"):
        if tag in kind:
            return jnp.float32
    return jnp.bfloat16


def fnet_kernel(x_ref,
                w0_ref, b0_ref,
                w1_ref, b1_ref,
                w2_ref, b2_ref,
                w3_ref, b3_ref,
                wot_ref, bo_ref,
                o_ref,
                *, tanh_dtype):
    tile = x_ref.shape[0]
    sub = SUB_TILE if (tile >= SUB_TILE and tile % SUB_TILE == 0) else tile
    n_sub = tile // sub

    def hidden_layer(h, w_ref, b_ref):
        # MXU: bf16 operands, f32 accumulation. Weights are read from their
        # VMEM refs here (not hoisted) to keep vreg pressure low.
        a = jnp.dot(h, w_ref[...], preferred_element_type=jnp.float32) + b_ref[...]
        return jnp.tanh(a.astype(tanh_dtype)).astype(jnp.bfloat16)

    def body(i, carry):
        r = pl.multiple_of(i * sub, sub)

        # ---- fc0: Linear(4,128)+tanh on the VPU (K=4 would waste the MXU) ----
        x = x_ref[pl.ds(r, sub), :].astype(jnp.float32)            # (sub, 4)
        a0 = b0_ref[...]                                            # (1, 128)
        a0 = a0 + x[:, 0:1] * w0_ref[0:1, :]
        a0 = a0 + x[:, 1:2] * w0_ref[1:2, :]
        a0 = a0 + x[:, 2:3] * w0_ref[2:3, :]
        a0 = a0 + x[:, 3:4] * w0_ref[3:4, :]
        h = jnp.tanh(a0.astype(tanh_dtype)).astype(jnp.bfloat16)   # (sub, 128)

        # ---- fclist: 3 x [Linear(128,128)+tanh] on the MXU ----
        h = hidden_layer(h, w1_ref, b1_ref)
        h = hidden_layer(h, w2_ref, b2_ref)
        h = hidden_layer(h, w3_ref, b3_ref)

        # ---- fout: Linear(128,2) as VPU multiply + lane reduction (off MXU) ----
        hf = h.astype(jnp.float32)
        y0 = jnp.sum(hf * wot_ref[0:1, :], axis=-1, keepdims=True) + bo_ref[0:1, 0:1]
        y1 = jnp.sum(hf * wot_ref[1:2, :], axis=-1, keepdims=True) + bo_ref[0:1, 1:2]
        o_ref[pl.ds(r, sub), 0:1] = y0.astype(o_ref.dtype)
        o_ref[pl.ds(r, sub), 1:2] = y1.astype(o_ref.dtype)
        return carry

    # Partial unroll: enough independent layer chains for MXU/EUP/XLU overlap
    # without blowing up instruction memory or vreg live ranges.
    lax.fori_loop(0, n_sub, body, 0, unroll=min(UNROLL, n_sub))


def f_net_forward(x, params, *, tile_b=None, tanh_dtype=None):
    """x: (B, 4) float32.  params: list of (W, b) pairs.  Returns (B, 2) float32."""
    B = x.shape[0]
    (w0, b0), (w1, b1), (w2, b2), (w3, b3), (wo, bo) = params
    if tanh_dtype is None:
        tanh_dtype = _default_tanh_dtype()

    # --- batch tile selection ---
    if tile_b is None:
        tile_b = DEFAULT_TILE_B
    tile_b = max(8, min(int(tile_b), B))
    # Keep >= 2 grid steps when the batch can be split: the "parallel" grid
    # axis only feeds both v7x TensorCores with grid_len >= 2.  Costs one
    # extra ~0.35us step on single-TC chips, negligible at these tile sizes.
    if B >= 16 and tile_b > (B + 1) // 2:
        tile_b = (B + 1) // 2
    grid_len = -(-B // tile_b)
    tile_b = -(-B // grid_len)                     # rebalance -> small padding
    if tile_b >= SUB_TILE:
        tile_b = ((tile_b + SUB_TILE - 1) // SUB_TILE) * SUB_TILE
    else:
        tile_b = ((tile_b + 7) // 8) * 8           # sublane constraint
    grid_len = -(-B // tile_b)
    B_pad = grid_len * tile_b

    # x DMA'd as bf16 (halves the input block); layer-0 math is f32 in-kernel.
    x_in = x.astype(jnp.bfloat16)
    if B_pad != B:
        x_in = jnp.pad(x_in, ((0, B_pad - B), (0, 0)))

    # Layer-0 / output-layer weights stay f32 (VPU path); hidden weights bf16 (MXU).
    w0f = w0.astype(jnp.float32)                   # (4, 128)
    wot = wo.astype(jnp.float32).T                 # (2, 128) lane-major rows
    w1b, w2b, w3b = (w.astype(jnp.bfloat16) for w in (w1, w2, w3))
    b0f, b1f, b2f, b3f = (b.astype(jnp.float32) for b in (b0, b1, b2, b3))
    bof = bo.astype(jnp.float32)                   # (1, 2)

    def weight_spec(shape):
        # Resident operands (constant index_map) -> single-buffer them.
        return pl.BlockSpec(shape, lambda i: (0, 0), pipeline_mode=pl.Buffered(1))

    weight_args = (w0f, b0f, w1b, b1f, w2b, b2f, w3b, b3f, wot, bof)
    param_bytes = sum(int(a.size) * a.dtype.itemsize for a in weight_args)
    flops = 2 * B_pad * (IN_DIM * HIDDEN + N_LAYERS * HIDDEN * HIDDEN + HIDDEN * OUT_DIM)
    transcendentals = (N_LAYERS + 1) * HIDDEN * B_pad
    bytes_accessed = (int(x_in.size) * x_in.dtype.itemsize
                      + B_pad * OUT_DIM * 4
                      + param_bytes)

    kernel = functools.partial(fnet_kernel, tanh_dtype=tanh_dtype)

    out = pl.pallas_call(
        kernel,
        out_shape=jax.ShapeDtypeStruct((B_pad, OUT_DIM), jnp.float32),
        grid_spec=pltpu.PrefetchScalarGridSpec(
            num_scalar_prefetch=0,
            grid=(grid_len,),
            in_specs=[
                pl.BlockSpec((tile_b, IN_DIM), lambda i: (i, 0)),
                weight_spec(w0f.shape), weight_spec(b0f.shape),
                weight_spec(w1b.shape), weight_spec(b1f.shape),
                weight_spec(w2b.shape), weight_spec(b2f.shape),
                weight_spec(w3b.shape), weight_spec(b3f.shape),
                weight_spec(wot.shape), weight_spec(bof.shape),
            ],
            out_specs=pl.BlockSpec((tile_b, OUT_DIM), lambda i: (i, 0)),
        ),
        compiler_params=pltpu.CompilerParams(
            dimension_semantics=("parallel",),
        ),
        cost_estimate=pl.CostEstimate(
            flops=int(flops),
            transcendentals=int(transcendentals),
            bytes_accessed=int(bytes_accessed),
        ),
    )(x_in, *weight_args)

    return out[:B] if B_pad != B else out


def init_params(key):
    """Deterministic init mimicking PyTorch nn.Linear default (U[-1/sqrt(fan_in), +])."""
    dims = [(IN_DIM, HIDDEN)] + [(HIDDEN, HIDDEN)] * N_LAYERS + [(HIDDEN, OUT_DIM)]
    params = []
    for (fan_in, fan_out) in dims:
        key, kw, kb = jax.random.split(key, 3)
        bound = 1.0 / jnp.sqrt(fan_in)
        w = jax.random.uniform(kw, (fan_in, fan_out), jnp.float32, -bound, bound)
        b = jax.random.uniform(kb, (1, fan_out), jnp.float32, -bound, bound)
        params.append((w, b))
    return params


def f_net_reference_f32(x, params):
    h = x.astype(jnp.float32)
    for idx, (w, b) in enumerate(params):
        h = h @ w + b
        if idx < len(params) - 1:
            h = jnp.tanh(h)
    return h


def f_net_reference_kernel_arith(x, params, tanh_dtype):
    """Mirrors the kernel arithmetic: bf16 x, f32 VPU layer-0 / output layer,
    bf16 MXU hidden layers with f32 accumulation, tanh in `tanh_dtype`."""
    (w0, b0), (w1, b1), (w2, b2), (w3, b3), (wo, bo) = params
    xq = x.astype(jnp.bfloat16).astype(jnp.float32)
    a0 = xq @ w0.astype(jnp.float32) + b0.astype(jnp.float32)
    h = jnp.tanh(a0.astype(tanh_dtype)).astype(jnp.bfloat16)
    for (w, b) in ((w1, b1), (w2, b2), (w3, b3)):
        a = jnp.dot(h, w.astype(jnp.bfloat16),
                    preferred_element_type=jnp.float32) + b.astype(jnp.float32)
        h = jnp.tanh(a.astype(tanh_dtype)).astype(jnp.bfloat16)
    hf = h.astype(jnp.float32)
    return hf @ wo.astype(jnp.float32) + bo.astype(jnp.float32)


if __name__ == "__main__":
    key = jax.random.PRNGKey(0)
    key, kx = jax.random.split(key)
    params = init_params(key)
    tanh_dtype = _default_tanh_dtype()

    # Primary small-batch check.
    B = 8
    x = jax.random.normal(kx, (B, IN_DIM), jnp.float32)
    out = jax.block_until_ready(f_net_forward(x, params))
    assert out.shape == (B, OUT_DIM)
    ref_k = f_net_reference_kernel_arith(x, params, tanh_dtype)
    ref_f = f_net_reference_f32(x, params)
    assert jnp.allclose(out, ref_k, atol=2e-2, rtol=2e-2), "kernel-arith mismatch"
    assert jnp.allclose(out, ref_f, atol=8e-2, rtol=8e-2), "f32 reference mismatch"

    # Padding / multi-step grid / sub-tile path check (still small).
    B2 = 300
    key, kx2 = jax.random.split(key)
    x2 = jax.random.normal(kx2, (B2, IN_DIM), jnp.float32)
    out2 = jax.block_until_ready(f_net_forward(x2, params))
    assert out2.shape == (B2, OUT_DIM)
    ref_k2 = f_net_reference_kernel_arith(x2, params, tanh_dtype)
    assert jnp.allclose(out2, ref_k2, atol=2e-2, rtol=2e-2), "padded-batch mismatch"

    print("KERNEL_OK")
</pallas_src>

<mosaic_0001>
module attributes {stable_mosaic.version = 11 : i64} {
  func.func @fnet_kernel(%arg0: i32, %arg1: memref<8x4xbf16, #tpu.memory_space<vmem>>, %arg2: memref<4x128xf32, #tpu.memory_space<vmem>>, %arg3: memref<1x128xf32, #tpu.memory_space<vmem>>, %arg4: memref<128x128xbf16, #tpu.memory_space<vmem>>, %arg5: memref<1x128xf32, #tpu.memory_space<vmem>>, %arg6: memref<128x128xbf16, #tpu.memory_space<vmem>>, %arg7: memref<1x128xf32, #tpu.memory_space<vmem>>, %arg8: memref<128x128xbf16, #tpu.memory_space<vmem>>, %arg9: memref<1x128xf32, #tpu.memory_space<vmem>>, %arg10: memref<2x128xf32, #tpu.memory_space<vmem>>, %arg11: memref<1x2xf32, #tpu.memory_space<vmem>>, %arg12: memref<8x2xf32, #tpu.memory_space<vmem>>) attributes {dimension_semantics = [#tpu.dimension_semantics<parallel>], iteration_bounds = array<i64: 1>, scalar_prefetch = 0 : i64, scratch_operands = 0 : i64, tpu.core_type = #tpu.core_type<tc>, window_params = [{transform_indices = @transform_0, window_bounds = array<i64: 8, 4>}, {pipeline_mode = #tpu.pipeline_mode<synchronous>, transform_indices = @transform_1, window_bounds = array<i64: 4, 128>}, {pipeline_mode = #tpu.pipeline_mode<synchronous>, transform_indices = @transform_2, window_bounds = array<i64: 1, 128>}, {pipeline_mode = #tpu.pipeline_mode<synchronous>, transform_indices = @transform_3, window_bounds = array<i64: 128, 128>}, {pipeline_mode = #tpu.pipeline_mode<synchronous>, transform_indices = @transform_4, window_bounds = array<i64: 1, 128>}, {pipeline_mode = #tpu.pipeline_mode<synchronous>, transform_indices = @transform_5, window_bounds = array<i64: 128, 128>}, {pipeline_mode = #tpu.pipeline_mode<synchronous>, transform_indices = @transform_6, window_bounds = array<i64: 1, 128>}, {pipeline_mode = #tpu.pipeline_mode<synchronous>, transform_indices = @transform_7, window_bounds = array<i64: 128, 128>}, {pipeline_mode = #tpu.pipeline_mode<synchronous>, transform_indices = @transform_8, window_bounds = array<i64: 1, 128>}, {pipeline_mode = #tpu.pipeline_mode<synchronous>, transform_indices = @transform_9, window_bounds = array<i64: 2, 128>}, {pipeline_mode = #tpu.pipeline_mode<synchronous>, transform_indices = @transform_10, window_bounds = array<i64: 1, 2>}, {transform_indices = @transform_11, window_bounds = array<i64: 8, 2>}]} {
    %c0_i32 = arith.constant 0 : i32
    %c8_i32 = arith.constant 8 : i32
    %0 = arith.muli %c0_i32, %c8_i32 : i32
    %1 = tpu.assume_multiple %0, 8 : i32
    %2 = arith.index_cast %1 : i32 to index
    %c0 = arith.constant 0 : index
    %3 = vector.load %arg1[%2, %c0] : memref<8x4xbf16, #tpu.memory_space<vmem>>, vector<8x4xbf16>
    %4 = arith.extf %3 : vector<8x4xbf16> to vector<8x4xf32>
    %c0_0 = arith.constant 0 : index
    %c0_1 = arith.constant 0 : index
    %5 = vector.load %arg3[%c0_0, %c0_1] : memref<1x128xf32, #tpu.memory_space<vmem>>, vector<1x128xf32>
    %6 = vector.extract_strided_slice %4 {offsets = [0, 0], sizes = [8, 1], strides = [1, 1]} : vector<8x4xf32> to vector<8x1xf32>
    %c0_2 = arith.constant 0 : index
    %c0_3 = arith.constant 0 : index
    %7 = vector.load %arg2[%c0_2, %c0_3] : memref<4x128xf32, #tpu.memory_space<vmem>>, vector<1x128xf32>
    %8 = vector.broadcast %6 : vector<8x1xf32> to vector<8x128xf32>
    %9 = vector.broadcast %7 : vector<1x128xf32> to vector<8x128xf32>
    %10 = arith.mulf %8, %9 : vector<8x128xf32>
    %11 = vector.broadcast %5 : vector<1x128xf32> to vector<8x128xf32>
    %12 = arith.addf %11, %10 : vector<8x128xf32>
    %13 = vector.extract_strided_slice %4 {offsets = [0, 1], sizes = [8, 1], strides = [1, 1]} : vector<8x4xf32> to vector<8x1xf32>
    %c1 = arith.constant 1 : index
    %c0_4 = arith.constant 0 : index
    %14 = vector.load %arg2[%c1, %c0_4] : memref<4x128xf32, #tpu.memory_space<vmem>>, vector<1x128xf32>
    %15 = vector.broadcast %13 : vector<8x1xf32> to vector<8x128xf32>
    %16 = vector.broadcast %14 : vector<1x128xf32> to vector<8x128xf32>
    %17 = arith.mulf %15, %16 : vector<8x128xf32>
    %18 = arith.addf %12, %17 : vector<8x128xf32>
    %19 = vector.extract_strided_slice %4 {offsets = [0, 2], sizes = [8, 1], strides = [1, 1]} : vector<8x4xf32> to vector<8x1xf32>
    %c2 = arith.constant 2 : index
    %c0_5 = arith.constant 0 : index
    %20 = vector.load %arg2[%c2, %c0_5] : memref<4x128xf32, #tpu.memory_space<vmem>>, vector<1x128xf32>
    %21 = vector.broadcast %19 : vector<8x1xf32> to vector<8x128xf32>
    %22 = vector.broadcast %20 : vector<1x128xf32> to vector<8x128xf32>
    %23 = arith.mulf %21, %22 : vector<8x128xf32>
    %24 = arith.addf %18, %23 : vector<8x128xf32>
    %25 = vector.extract_strided_slice %4 {offsets = [0, 3], sizes = [8, 1], strides = [1, 1]} : vector<8x4xf32> to vector<8x1xf32>
    %c3 = arith.constant 3 : index
    %c0_6 = arith.constant 0 : index
    %26 = vector.load %arg2[%c3, %c0_6] : memref<4x128xf32, #tpu.memory_space<vmem>>, vector<1x128xf32>
    %27 = vector.broadcast %25 : vector<8x1xf32> to vector<8x128xf32>
    %28 = vector.broadcast %26 : vector<1x128xf32> to vector<8x128xf32>
    %29 = arith.mulf %27, %28 : vector<8x128xf32>
    %30 = arith.addf %24, %29 : vector<8x128xf32>
    %31 = arith.truncf %30 : vector<8x128xf32> to vector<8x128xbf16>
    %32 = math.tanh %31 : vector<8x128xbf16>
    %c0_7 = arith.constant 0 : index
    %c0_8 = arith.constant 0 : index
    %33 = vector.load %arg4[%c0_7, %c0_8] : memref<128x128xbf16, #tpu.memory_space<vmem>>, vector<128x128xbf16>
    %cst = arith.constant dense<0.000000e+00> : vector<8x128xf32>
    %34 = tpu.matmul %32, %33, %cst {dimension_numbers = #tpu.dot_dimension_numbers<[1], [0], [0], [1], [0, 0, 1, 1], [], []>} : vector<8x128xbf16>, vector<128x128xbf16>, vector<8x128xf32> -> vector<8x128xf32>
    %c0_9 = arith.constant 0 : index
    %c0_10 = arith.constant 0 : index
    %35 = vector.load %arg5[%c0_9, %c0_10] : memref<1x128xf32, #tpu.memory_space<vmem>>, vector<1x128xf32>
    %36 = vector.broadcast %35 : vector<1x128xf32> to vector<8x128xf32>
    %37 = arith.addf %34, %36 : vector<8x128xf32>
    %38 = arith.truncf %37 : vector<8x128xf32> to vector<8x128xbf16>
    %39 = math.tanh %38 : vector<8x128xbf16>
    %c0_11 = arith.constant 0 : index
    %c0_12 = arith.constant 0 : index
    %40 = vector.load %arg6[%c0_11, %c0_12] : memref<128x128xbf16, #tpu.memory_space<vmem>>, vector<128x128xbf16>
    %cst_13 = arith.constant dense<0.000000e+00> : vector<8x128xf32>
    %41 = tpu.matmul %39, %40, %cst_13 {dimension_numbers = #tpu.dot_dimension_numbers<[1], [0], [0], [1], [0, 0, 1, 1], [], []>} : vector<8x128xbf16>, vector<128x128xbf16>, vector<8x128xf32> -> vector<8x128xf32>
    %c0_14 = arith.constant 0 : index
    %c0_15 = arith.constant 0 : index
    %42 = vector.load %arg7[%c0_14, %c0_15] : memref<1x128xf32, #tpu.memory_space<vmem>>, vector<1x128xf32>
    %43 = vector.broadcast %42 : vector<1x128xf32> to vector<8x128xf32>
    %44 = arith.addf %41, %43 : vector<8x128xf32>
    %45 = arith.truncf %44 : vector<8x128xf32> to vector<8x128xbf16>
    %46 = math.tanh %45 : vector<8x128xbf16>
    %c0_16 = arith.constant 0 : index
    %c0_17 = arith.constant 0 : index
    %47 = vector.load %arg8[%c0_16, %c0_17] : memref<128x128xbf16, #tpu.memory_space<vmem>>, vector<128x128xbf16>
    %cst_18 = arith.constant dense<0.000000e+00> : vector<8x128xf32>
    %48 = tpu.matmul %46, %47, %cst_18 {dimension_numbers = #tpu.dot_dimension_numbers<[1], [0], [0], [1], [0, 0, 1, 1], [], []>} : vector<8x128xbf16>, vector<128x128xbf16>, vector<8x128xf32> -> vector<8x128xf32>
    %c0_19 = arith.constant 0 : index
    %c0_20 = arith.constant 0 : index
    %49 = vector.load %arg9[%c0_19, %c0_20] : memref<1x128xf32, #tpu.memory_space<vmem>>, vector<1x128xf32>
    %50 = vector.broadcast %49 : vector<1x128xf32> to vector<8x128xf32>
    %51 = arith.addf %48, %50 : vector<8x128xf32>
    %52 = arith.truncf %51 : vector<8x128xf32> to vector<8x128xbf16>
    %53 = math.tanh %52 : vector<8x128xbf16>
    %54 = arith.extf %53 : vector<8x128xbf16> to vector<8x128xf32>
    %c0_21 = arith.constant 0 : index
    %c0_22 = arith.constant 0 : index
    %55 = vector.load %arg10[%c0_21, %c0_22] : memref<2x128xf32, #tpu.memory_space<vmem>>, vector<1x128xf32>
    %56 = vector.broadcast %55 : vector<1x128xf32> to vector<8x128xf32>
    %57 = arith.mulf %54, %56 : vector<8x128xf32>
    %cst_23 = arith.constant dense<0.000000e+00> : vector<8xf32>
    %58 = vector.multi_reduction <add>, %57, %cst_23 [1] : vector<8x128xf32> to vector<8xf32>
    %59 = vector.shape_cast %58 : vector<8xf32> to vector<8x1xf32>
    %c0_24 = arith.constant 0 : index
    %c0_25 = arith.constant 0 : index
    %60 = vector.load %arg11[%c0_24, %c0_25] : memref<1x2xf32, #tpu.memory_space<vmem>>, vector<1x1xf32>
    %61 = vector.broadcast %60 : vector<1x1xf32> to vector<8x1xf32>
    %62 = arith.addf %59, %61 : vector<8x1xf32>
    %c1_26 = arith.constant 1 : index
    %c0_27 = arith.constant 0 : index
    %63 = vector.load %arg10[%c1_26, %c0_27] : memref<2x128xf32, #tpu.memory_space<vmem>>, vector<1x128xf32>
    %64 = vector.broadcast %63 : vector<1x128xf32> to vector<8x128xf32>
    %65 = arith.mulf %54, %64 : vector<8x128xf32>
    %cst_28 = arith.constant dense<0.000000e+00> : vector<8xf32>
    %66 = vector.multi_reduction <add>, %65, %cst_28 [1] : vector<8x128xf32> to vector<8xf32>
    %67 = vector.shape_cast %66 : vector<8xf32> to vector<8x1xf32>
    %c0_29 = arith.constant 0 : index
    %c1_30 = arith.constant 1 : index
    %68 = vector.load %arg11[%c0_29, %c1_30] : memref<1x2xf32, #tpu.memory_space<vmem>>, vector<1x1xf32>
    %69 = vector.broadcast %68 : vector<1x1xf32> to vector<8x1xf32>
    %70 = arith.addf %67, %69 : vector<8x1xf32>
    %71 = arith.index_cast %1 : i32 to index
    %c0_31 = arith.constant 0 : index
    %72 = vector.load %arg12[%71, %c0_31] : memref<8x2xf32, #tpu.memory_space<vmem>>, vector<8x1xf32>
    tpu.vector_store %arg12[%71, %c0_31], %62 {strides = array<i32>} : memref<8x2xf32, #tpu.memory_space<vmem>>, vector<8x1xf32>,
    %73 = arith.index_cast %1 : i32 to index
    %c1_32 = arith.constant 1 : index
    %74 = vector.load %arg12[%73, %c1_32] : memref<8x2xf32, #tpu.memory_space<vmem>>, vector<8x1xf32>
    tpu.vector_store %arg12[%73, %c1_32], %70 {strides = array<i32>} : memref<8x2xf32, #tpu.memory_space<vmem>>, vector<8x1xf32>,
    %c1_i32 = arith.constant 1 : i32
    return
  }
  func.func @transform_0(%arg0: i32) -> (i32, i32) {
    %c0_i32 = arith.constant 0 : i32
    %c0_i32_0 = arith.constant 0 : i32
    return %arg0, %c0_i32 : i32, i32
  }
  func.func @transform_1(%arg0: i32) -> (i32, i32) {
    %c0_i32 = arith.constant 0 : i32
    %c0_i32_0 = arith.constant 0 : i32
    %c0_i32_1 = arith.constant 0 : i32
    return %c0_i32, %c0_i32_0 : i32, i32
  }
  func.func @transform_2(%arg0: i32) -> (i32, i32) {
    %c0_i32 = arith.constant 0 : i32
    %c0_i32_0 = arith.constant 0 : i32
    %c0_i32_1 = arith.constant 0 : i32
    return %c0_i32, %c0_i32_0 : i32, i32
  }
  func.func @transform_3(%arg0: i32) -> (i32, i32) {
    %c0_i32 = arith.constant 0 : i32
    %c0_i32_0 = arith.constant 0 : i32
    %c0_i32_1 = arith.constant 0 : i32
    return %c0_i32, %c0_i32_0 : i32, i32
  }
  func.func @transform_4(%arg0: i32) -> (i32, i32) {
    %c0_i32 = arith.constant 0 : i32
    %c0_i32_0 = arith.constant 0 : i32
    %c0_i32_1 = arith.constant 0 : i32
    return %c0_i32, %c0_i32_0 : i32, i32
  }
  func.func @transform_5(%arg0: i32) -> (i32, i32) {
    %c0_i32 = arith.constant 0 : i32
    %c0_i32_0 = arith.constant 0 : i32
    %c0_i32_1 = arith.constant 0 : i32
    return %c0_i32, %c0_i32_0 : i32, i32
  }
  func.func @transform_6(%arg0: i32) -> (i32, i32) {
    %c0_i32 = arith.constant 0 : i32
    %c0_i32_0 = arith.constant 0 : i32
    %c0_i32_1 = arith.constant 0 : i32
    return %c0_i32, %c0_i32_0 : i32, i32
  }
  func.func @transform_7(%arg0: i32) -> (i32, i32) {
    %c0_i32 = arith.constant 0 : i32
    %c0_i32_0 = arith.constant 0 : i32
    %c0_i32_1 = arith.constant 0 : i32
    return %c0_i32, %c0_i32_0 : i32, i32
  }
  func.func @transform_8(%arg0: i32) -> (i32, i32) {
    %c0_i32 = arith.constant 0 : i32
    %c0_i32_0 = arith.constant 0 : i32
    %c0_i32_1 = arith.constant 0 : i32
    return %c0_i32, %c0_i32_0 : i32, i32
  }
  func.func @transform_9(%arg0: i32) -> (i32, i32) {
    %c0_i32 = arith.constant 0 : i32
    %c0_i32_0 = arith.constant 0 : i32
    %c0_i32_1 = arith.constant 0 : i32
    return %c0_i32, %c0_i32_0 : i32, i32
  }
  func.func @transform_10(%arg0: i32) -> (i32, i32) {
    %c0_i32 = arith.constant 0 : i32
    %c0_i32_0 = arith.constant 0 : i32
    %c0_i32_1 = arith.constant 0 : i32
    return %c0_i32, %c0_i32_0 : i32, i32
  }
  func.func @transform_11(%arg0: i32) -> (i32, i32) {
    %c0_i32 = arith.constant 0 : i32
    %c0_i32_0 = arith.constant 0 : i32
    return %arg0, %c0_i32 : i32, i32
  }
}

</mosaic_0001>

<llo_original>
// kernel: tpu_custom_call.1
$region0: #{tpu_custom_call.1}
  #allocation0 [shape = 'u32[]', space=smem, size = 0x4, offset = 0x4, fixed_abs, tag = 'smem constant byte address 0x4 - core index']
  #allocation1 [shape = 'u32[144,128]{1,0:T(1,128)}', space=vmem, size = 0x12000, scoped, tag = 'internal scratch']
  %s0 = inlined_call_operand.vmem [shape: bf16[8,4], index: 0, kind: input, shape index: {}]
  %s1 = inlined_call_operand.vmem [shape: f32[4,128], index: 1, kind: input, shape index: {}]
  %s2 = inlined_call_operand.vmem [shape: f32[1,128], index: 2, kind: input, shape index: {}]
  %s3 = inlined_call_operand.hbm [shape: bf16[128,128], index: 3, kind: input, shape index: {}]
  %s4 = inlined_call_operand.vmem [shape: f32[1,128], index: 4, kind: input, shape index: {}]
  %s5 = inlined_call_operand.hbm [shape: bf16[128,128], index: 5, kind: input, shape index: {}]
  %s6 = inlined_call_operand.vmem [shape: f32[1,128], index: 6, kind: input, shape index: {}]
  %s7 = inlined_call_operand.hbm [shape: bf16[128,128], index: 7, kind: input, shape index: {}]
  %s8 = inlined_call_operand.vmem [shape: f32[1,128], index: 8, kind: input, shape index: {}]
  %s9 = inlined_call_operand.vmem [shape: f32[2,128], index: 9, kind: input, shape index: {}]
  %s10 = inlined_call_operand.vmem [shape: f32[1,2], index: 10, kind: input, shape index: {}]
  %s11 = inlined_call_operand.vmem [shape: f32[8,2], index: 11, kind: output, shape index: {}]
  %s12 = sld [smem:[#allocation0]]
  $region66: #{tpu_custom_call.1} parent=0
    _
  %s14 = ssub.s32 1, %s12
  %s15 = scalar_select 0, %s14, %s12
  $region1: #{tpu_custom_call.1} parent=0
    #allocation2 [shape = 'u8[32768]{0}', space=vmem, size = 0x8000, scoped, tag = 'input window, operand 3, single buffered']
    #allocation3 [shape = 's32[1]{0}', space=sflag, size = 0x4, scoped, tag = 'scoped memory for tpu_custom_call.1']
    #allocation4 [shape = 'u8[32768]{0}', space=vmem, size = 0x8000, scoped, tag = 'input window, operand 5, single buffered']
    #allocation5 [shape = 's32[1]{0}', space=sflag, size = 0x4, scoped, tag = 'scoped memory for tpu_custom_call.1']
    #allocation6 [shape = 'u8[32768]{0}', space=vmem, size = 0x8000, scoped, tag = 'input window, operand 7, single buffered']
    %16 = vsyncpa [#allocation3], 0
    %17 = vsyncpa [#allocation5], 0
    // Predicated region
    $region2: #{tpu_custom_call.1} parent=1 // pred_check
      _
    $region3: #{tpu_custom_call.1} parent=1 // pred_check_branch
      %19 = sbr.rel (0) target = $region5
    $region4: #{tpu_custom_call.1} parent=1 // pred_region
      _
    $region5: #{tpu_custom_call.1} parent=1 // pred_fallthru
      _
    // Predicated region
    $region6: #{tpu_custom_call.1} parent=1 // pred_check
      _
    $region7: #{tpu_custom_call.1} parent=1 // pred_check_branch
      %21 = sbr.rel (0) target = $region9
    $region8: #{tpu_custom_call.1} parent=1 // pred_region
      _
    $region9: #{tpu_custom_call.1} parent=1 // pred_fallthru
      _
    // Predicated region
    $region10: #{tpu_custom_call.1} parent=1 // pred_check
      _
    $region11: #{tpu_custom_call.1} parent=1 // pred_check_branch
      %23 = sbr.rel (0) target = $region13
    $region12: #{tpu_custom_call.1} parent=1 // pred_region
      _
    $region13: #{tpu_custom_call.1} parent=1 // pred_fallthru
      _
    // Predicated region
    $region14: #{tpu_custom_call.1} parent=1 // pred_check
      _
    $region15: #{tpu_custom_call.1} parent=1 // pred_check_branch
      %25 = sbr.rel (0) target = $region17
    $region16: #{tpu_custom_call.1} parent=1 // pred_region
      %s27 = ssub.s32 1024, 1024
      %28 = vsyncadd [#allocation3], %s27
      %s29 = sshll.u32 [#allocation2], 4
      %s30 = int_to_ptr.vmem [resolvable:$true] %s29
      %35 = dma.hbm_to_vmem [thread:$0]  %s3, 1024, %s30, [#allocation3], 64, 64, 4
    $region17: #{tpu_custom_call.1} parent=1 // pred_fallthru
      _
    // Predicated region
    $region18: #{tpu_custom_call.1} parent=1 // pred_check
      _
    $region19: #{tpu_custom_call.1} parent=1 // pred_check_branch
      %37 = sbr.rel (0) target = $region21
    $region20: #{tpu_custom_call.1} parent=1 // pred_region
      _
    $region21: #{tpu_custom_call.1} parent=1 // pred_fallthru
      _
    // Predicated region
    $region22: #{tpu_custom_call.1} parent=1 // pred_check
      _
    $region23: #{tpu_custom_call.1} parent=1 // pred_check_branch
      %39 = sbr.rel (0) target = $region25
    $region24: #{tpu_custom_call.1} parent=1 // pred_region
      %s41 = ssub.s32 1024, 1024
      %42 = vsyncadd [#allocation5], %s41
      %s43 = sshll.u32 [#allocation4], 4
      %s44 = int_to_ptr.vmem [resolvable:$true] %s43
      %49 = dma.hbm_to_vmem [thread:$0]  %s5, 1024, %s44, [#allocation5], 64, 64, 4
    $region25: #{tpu_custom_call.1} parent=1 // pred_fallthru
      _
    // Predicated region
    $region26: #{tpu_custom_call.1} parent=1 // pred_check
      _
    $region27: #{tpu_custom_call.1} parent=1 // pred_check_branch
      %51 = sbr.rel (0) target = $region29
    $region28: #{tpu_custom_call.1} parent=1 // pred_region
      _
    $region29: #{tpu_custom_call.1} parent=1 // pred_fallthru
      _
    // Predicated region
    $region30: #{tpu_custom_call.1} parent=1 // pred_check
      _
    $region31: #{tpu_custom_call.1} parent=1 // pred_check_branch
      %53 = sbr.rel (0) target = $region33
    $region32: #{tpu_custom_call.1} parent=1 // pred_region
      %s55 = ssub.s32 1024, 1024
      %56 = vsyncadd [#allocation5], %s55
      %s57 = sshll.u32 [#allocation6], 4
      %s58 = int_to_ptr.vmem [resolvable:$true] %s57
      %63 = dma.hbm_to_vmem [thread:$0]  %s7, 1024, %s58, [#allocation5], 64, 64, 4
    $region33: #{tpu_custom_call.1} parent=1 // pred_fallthru
      _
    // Predicated region
    $region34: #{tpu_custom_call.1} parent=1 // pred_check
      _
    $region35: #{tpu_custom_call.1} parent=1 // pred_check_branch
      %65 = sbr.rel (0) target = $region37
    $region36: #{tpu_custom_call.1} parent=1 // pred_region
      _
    $region37: #{tpu_custom_call.1} parent=1 // pred_fallthru
      _
    // Predicated region
    $region38: #{tpu_custom_call.1} parent=1 // pred_check
      _
    $region39: #{tpu_custom_call.1} parent=1 // pred_check_branch
      %67 = sbr.rel (0) target = $region41
    $region40: #{tpu_custom_call.1} parent=1 // pred_region
      _
    $region41: #{tpu_custom_call.1} parent=1 // pred_fallthru
      _
    // Predicated region
    $region42: #{tpu_custom_call.1} parent=1 // pred_check
      _
    $region43: #{tpu_custom_call.1} parent=1 // pred_check_branch
      %69 = sbr.rel (0) target = $region45
    $region44: #{tpu_custom_call.1} parent=1 // pred_region
      _
    $region45: #{tpu_custom_call.1} parent=1 // pred_fallthru
      _
    // Predicated region
    $region46: #{tpu_custom_call.1} parent=1 // pred_check
      _
    $region47: #{tpu_custom_call.1} parent=1 // pred_check_branch
      %71 = sbr.rel (0) target = $region49
    $region48: #{tpu_custom_call.1} parent=1 // pred_region
      %72 = dma.done [#allocation3], 1024
    $region49: #{tpu_custom_call.1} parent=1 // pred_fallthru
      _
    // Predicated region
    $region50: #{tpu_custom_call.1} parent=1 // pred_check
      _
    $region51: #{tpu_custom_call.1} parent=1 // pred_check_branch
      %74 = sbr.rel (0) target = $region53
    $region52: #{tpu_custom_call.1} parent=1 // pred_region
      %75 = dma.done [#allocation5], 1024
    $region53: #{tpu_custom_call.1} parent=1 // pred_fallthru
      _
    // Predicated region
    $region54: #{tpu_custom_call.1} parent=1 // pred_check
      _
    $region55: #{tpu_custom_call.1} parent=1 // pred_check_branch
      %77 = sbr.rel (0) target = $region57
    $region56: #{tpu_custom_call.1} parent=1 // pred_region
      %78 = dma.done [#allocation5], 1024
    $region57: #{tpu_custom_call.1} parent=1 // pred_fallthru
      _
    %v80 = vld [vmem:[%s0] sm:$0xf]
    %v81 = vunpack.c.l.bf16 %v80
    %v82 = vld [vmem:[%s2] sm:$0x1]
    %v83 = vld [vmem:[%s1] sm:$0x1]
    %85 = vset.pattern.permute.xlu0 0
    %86 = vperm.xlu0 %85, %v81
    %v87 = vpop.permute.xlu0 %86
    %v89 = vlaneseq
    %v90 = vshrl.u32 %v89, 7
    %v91 = vsub.s32 0, %v90
    %v92 = vrot.slane %v83, %v91
    %v93 = vmul.f32 %v87, %v92
    %v95 = vlaneseq
    %v96 = vshrl.u32 %v95, 7
    %v97 = vsub.s32 0, %v96
    %v98 = vrot.slane %v82, %v97
    %v100 = vadd.f32 %v98, %v93
    %v101 = vld [vmem:[%s1 + $0x1] sm:$0x1]
    %102 = vset.pattern.permute.xlu0 1
    %103 = vperm.xlu0 %102, %v81
    %v104 = vpop.permute.xlu0 %103
    %v106 = vlaneseq
    %v107 = vshrl.u32 %v106, 7
    %v108 = vsub.s32 0, %v107
    %v109 = vrot.slane %v101, %v108
    %v110 = vmul.f32 %v104, %v109
    %v111 = vadd.f32 %v100, %v110
    %v112 = vld [vmem:[%s1 + $0x2] sm:$0x1]
    %113 = vset.pattern.permute.xlu0 2
    %114 = vperm.xlu0 %113, %v81
    %v115 = vpop.permute.xlu0 %114
    %v117 = vlaneseq
    %v118 = vshrl.u32 %v117, 7
    %v119 = vsub.s32 0, %v118
    %v120 = vrot.slane %v112, %v119
    %v121 = vmul.f32 %v115, %v120
    %v122 = vadd.f32 %v111, %v121
    %v123 = vld [vmem:[%s1 + $0x3] sm:$0x1]
    %124 = vset.pattern.permute.xlu0 3
    %125 = vperm.xlu0 %124, %v81
    %v126 = vpop.permute.xlu0 %125
    %v128 = vlaneseq
    %v129 = vshrl.u32 %v128, 7
    %v130 = vsub.s32 0, %v129
    %v131 = vrot.slane %v123, %v130
    %v132 = vmul.f32 %v126, %v131
    %v133 = vadd.f32 %v122, %v132
    %v134 = vpack.c.bf16 %v133, %v133
    %v135 = vtanh.bf16.pop %v134
    %v136 = vld [vmem:[#allocation2] sm:$0xf]
    %v137 = vld [vmem:[#allocation2 + $0x4] sm:$0xf]
    %v138 = vld [vmem:[#allocation2 + $0x8] sm:$0xf]
    %v139 = vld [vmem:[#allocation2 + $0xc] sm:$0xf]
    %v140 = vld [vmem:[#allocation2 + $0x10] sm:$0xf]
    %v141 = vld [vmem:[#allocation2 + $0x14] sm:$0xf]
    %v142 = vld [vmem:[#allocation2 + $0x18] sm:$0xf]
    %v143 = vld [vmem:[#allocation2 + $0x1c] sm:$0xf]
    %v144 = vld [vmem:[#allocation2 + $0x20] sm:$0xf]
    %v145 = vld [vmem:[#allocation2 + $0x24] sm:$0xf]
    %v146 = vld [vmem:[#allocation2 + $0x28] sm:$0xf]
    %v147 = vld [vmem:[#allocation2 + $0x2c] sm:$0xf]
    %v148 = vld [vmem:[#allocation2 + $0x30] sm:$0xf]
    %v149 = vld [vmem:[#allocation2 + $0x34] sm:$0xf]
    %v150 = vld [vmem:[#allocation2 + $0x38] sm:$0xf]
    %v151 = vld [vmem:[#allocation2 + $0x3c] sm:$0xf]
    %v152 = vld [vmem:[%s4] sm:$0x1]
    %v154 = vlaneseq
    %v155 = vshrl.u32 %v154, 7
    %v156 = vsub.s32 0, %v155
    %v157 = vrot.slane %v152, %v156
    %v175 = vunpack.c.l.b16 %v136
    %v176 = vunpack.c.l.b16 %v137
    %v177 = vunpack.c.l.b16 %v138
    %v178 = vunpack.c.l.b16 %v139
    %v179 = vunpack.c.l.b16 %v140
    %v180 = vunpack.c.l.b16 %v141
    %v181 = vunpack.c.l.b16 %v142
    %v182 = vunpack.c.l.b16 %v143
    %v183 = vunpack.c.l.b16 %v144
    %v184 = vunpack.c.l.b16 %v145
    %v185 = vunpack.c.l.b16 %v146
    %v186 = vunpack.c.l.b16 %v147
    %v187 = vunpack.c.l.b16 %v148
    %v188 = vunpack.c.l.b16 %v149
    %v189 = vunpack.c.l.b16 %v150
    %v190 = vunpack.c.l.b16 %v151
    %v191 = vpack.c.b16 %v176, %v175
    %v192 = vpack.c.b16 %v178, %v177
    %v193 = vpack.c.b16 %v180, %v179
    %v194 = vpack.c.b16 %v182, %v181
    %v195 = vpack.c.b16 %v184, %v183
    %v196 = vpack.c.b16 %v186, %v185
    %v197 = vpack.c.b16 %v188, %v187
    %v198 = vpack.c.b16 %v190, %v189
    %207 = vmatprep.subr.bf16.mxu0 0
    %208 = vmatpush1.bf16.msra.mxu0 %v198
    %209 = vmatprep.subr.bf16.mxu0 0
    %210 = vmatpush1.bf16.msra.mxu0 %v197
    %211 = vmatprep.subr.bf16.mxu0 0
    %212 = vmatpush1.bf16.msra.mxu0 %v196
    %213 = vmatprep.subr.bf16.mxu0 0
    %214 = vmatpush1.bf16.msra.mxu0 %v195
    %215 = vmatprep.subr.bf16.mxu0 0
    %216 = vmatpush1.bf16.msra.mxu0 %v194
    %217 = vmatprep.subr.bf16.mxu0 0
    %218 = vmatpush1.bf16.msra.mxu0 %v193
    %219 = vmatprep.subr.bf16.mxu0 0
    %220 = vmatpush1.bf16.msra.mxu0 %v192
    %221 = vmatprep.subr.bf16.mxu0 0
    %222 = vmatpush1.bf16.msra.mxu0 %v191
    %223 = vmatprep.subr.bf16.mxu0 0
    %224 = vmatpush2.bf16.msra.mxu0 0
    %225 = vmatprep.subr.bf16.mxu0 0
    %226 = vmatpush2.bf16.msra.mxu0 0
    %227 = vmatprep.subr.bf16.mxu0 0
    %228 = vmatpush2.bf16.msra.mxu0 0
    %229 = vmatprep.subr.bf16.mxu0 0
    %230 = vmatpush2.bf16.msra.mxu0 0
    %231 = vmatprep.subr.bf16.mxu0 0
    %232 = vmatpush2.bf16.msra.mxu0 0
    %233 = vmatprep.subr.bf16.mxu0 0
    %234 = vmatpush2.bf16.msra.mxu0 0
    %235 = vmatprep.subr.bf16.mxu0 0
    %236 = vmatpush2.bf16.msra.mxu0 0
    %237 = vmatprep.subr.bf16.mxu0 0
    %238 = vmatpush2.bf16.msra.mxu0 0
    %239 = vmatprep.mubr.bf16.mxu0 0
    %240 = vmatmul.mubr.bf16.gmra.mxu0 %v135
    %v241 = vpop.f32.mrf.mxu0
    %v242 = vadd.f32 %v157, %v241
    %v243 = vpop.f32.mrf.mxu0
    %v244 = vpop.f32.mrf.mxu0
    %v245 = vpop.f32.mrf.mxu0
    %246 = vdwg.mxu0
    %v247 = vpack.c.bf16 %v242, %v242
    %v248 = vtanh.bf16.pop %v247
    %v249 = vld [vmem:[#allocation4] sm:$0xf]
    %v250 = vld [vmem:[#allocation4 + $0x4] sm:$0xf]
    %v251 = vld [vmem:[#allocation4 + $0x8] sm:$0xf]
    %v252 = vld [vmem:[#allocation4 + $0xc] sm:$0xf]
    %v253 = vld [vmem:[#allocation4 + $0x10] sm:$0xf]
    %v254 = vld [vmem:[#allocation4 + $0x14] sm:$0xf]
    %v255 = vld [vmem:[#allocation4 + $0x18] sm:$0xf]
    %v256 = vld [vmem:[#allocation4 + $0x1c] sm:$0xf]
    %v257 = vld [vmem:[#allocation4 + $0x20] sm:$0xf]
    %v258 = vld [vmem:[#allocation4 + $0x24] sm:$0xf]
    %v259 = vld [vmem:[#allocation4 + $0x28] sm:$0xf]
    %v260 = vld [vmem:[#allocation4 + $0x2c] sm:$0xf]
    %v261 = vld [vmem:[#allocation4 + $0x30] sm:$0xf]
    %v262 = vld [vmem:[#allocation4 + $0x34] sm:$0xf]
    %v263 = vld [vmem:[#allocation4 + $0x38] sm:$0xf]
    %v264 = vld [vmem:[#allocation4 + $0x3c] sm:$0xf]
    %v265 = vld [vmem:[%s6] sm:$0x1]
    %v267 = vlaneseq
    %v268 = vshrl.u32 %v267, 7
    %v269 = vsub.s32 0, %v268
    %v270 = vrot.slane %v265, %v269
    %v288 = vunpack.c.l.b16 %v249
    %v289 = vunpack.c.l.b16 %v250
    %v290 = vunpack.c.l.b16 %v251
    %v291 = vunpack.c.l.b16 %v252
    %v292 = vunpack.c.l.b16 %v253
    %v293 = vunpack.c.l.b16 %v254
    %v294 = vunpack.c.l.b16 %v255
    %v295 = vunpack.c.l.b16 %v256
    %v296 = vunpack.c.l.b16 %v257
    %v297 = vunpack.c.l.b16 %v258
    %v298 = vunpack.c.l.b16 %v259
    %v299 = vunpack.c.l.b16 %v260
    %v300 = vunpack.c.l.b16 %v261
    %v301 = vunpack.c.l.b16 %v262
    %v302 = vunpack.c.l.b16 %v263
    %v303 = vunpack.c.l.b16 %v264
    %v304 = vpack.c.b16 %v289, %v288
    %v305 = vpack.c.b16 %v291, %v290
    %v306 = vpack.c.b16 %v293, %v292
    %v307 = vpack.c.b16 %v295, %v294
    %v308 = vpack.c.b16 %v297, %v296
    %v309 = vpack.c.b16 %v299, %v298
    %v310 = vpack.c.b16 %v301, %v300
    %v311 = vpack.c.b16 %v303, %v302
    %320 = vmatprep.subr.bf16.mxu0 0
    %321 = vmatpush1.bf16.msra.mxu0 %v311
    %322 = vmatprep.subr.bf16.mxu0 0
    %323 = vmatpush1.bf16.msra.mxu0 %v310
    %324 = vmatprep.subr.bf16.mxu0 0
    %325 = vmatpush1.bf16.msra.mxu0 %v309
    %326 = vmatprep.subr.bf16.mxu0 0
    %327 = vmatpush1.bf16.msra.mxu0 %v308
    %328 = vmatprep.subr.bf16.mxu0 0
    %329 = vmatpush1.bf16.msra.mxu0 %v307
    %330 = vmatprep.subr.bf16.mxu0 0
    %331 = vmatpush1.bf16.msra.mxu0 %v306
    %332 = vmatprep.subr.bf16.mxu0 0
    %333 = vmatpush1.bf16.msra.mxu0 %v305
    %334 = vmatprep.subr.bf16.mxu0 0
    %335 = vmatpush1.bf16.msra.mxu0 %v304
    %336 = vmatprep.subr.bf16.mxu0 0
    %337 = vmatpush2.bf16.msra.mxu0 0
    %338 = vmatprep.subr.bf16.mxu0 0
    %339 = vmatpush2.bf16.msra.mxu0 0
    %340 = vmatprep.subr.bf16.mxu0 0
    %341 = vmatpush2.bf16.msra.mxu0 0
    %342 = vmatprep.subr.bf16.mxu0 0
    %343 = vmatpush2.bf16.msra.mxu0 0
    %344 = vmatprep.subr.bf16.mxu0 0
    %345 = vmatpush2.bf16.msra.mxu0 0
    %346 = vmatprep.subr.bf16.mxu0 0
    %347 = vmatpush2.bf16.msra.mxu0 0
    %348 = vmatprep.subr.bf16.mxu0 0
    %349 = vmatpush2.bf16.msra.mxu0 0
    %350 = vmatprep.subr.bf16.mxu0 0
    %351 = vmatpush2.bf16.msra.mxu0 0
    %352 = vmatprep.mubr.bf16.mxu0 0
    %353 = vmatmul.mubr.bf16.gmra.mxu0 %v248
    %v354 = vpop.f32.mrf.mxu0
    %v355 = vadd.f32 %v270, %v354
    %v356 = vpop.f32.mrf.mxu0
    %v357 = vpop.f32.mrf.mxu0
    %v358 = vpop.f32.mrf.mxu0
    %359 = vdwg.mxu0
    %v360 = vpack.c.bf16 %v355, %v355
    %v361 = vtanh.bf16.pop %v360
    %v362 = vld [vmem:[#allocation6] sm:$0xf]
    %v363 = vld [vmem:[#allocation6 + $0x4] sm:$0xf]
    %v364 = vld [vmem:[#allocation6 + $0x8] sm:$0xf]
    %v365 = vld [vmem:[#allocation6 + $0xc] sm:$0xf]
    %v366 = vld [vmem:[#allocation6 + $0x10] sm:$0xf]
    %v367 = vld [vmem:[#allocation6 + $0x14] sm:$0xf]
    %v368 = vld [vmem:[#allocation6 + $0x18] sm:$0xf]
    %v369 = vld [vmem:[#allocation6 + $0x1c] sm:$0xf]
    %v370 = vld [vmem:[#allocation6 + $0x20] sm:$0xf]
    %v371 = vld [vmem:[#allocation6 + $0x24] sm:$0xf]
    %v372 = vld [vmem:[#allocation6 + $0x28] sm:$0xf]
    %v373 = vld [vmem:[#allocation6 + $0x2c] sm:$0xf]
    %v374 = vld [vmem:[#allocation6 + $0x30] sm:$0xf]
    %v375 = vld [vmem:[#allocation6 + $0x34] sm:$0xf]
    %v376 = vld [vmem:[#allocation6 + $0x38] sm:$0xf]
    %v377 = vld [vmem:[#allocation6 + $0x3c] sm:$0xf]
    %v378 = vld [vmem:[%s8] sm:$0x1]
    %v380 = vlaneseq
    %v381 = vshrl.u32 %v380, 7
    %v382 = vsub.s32 0, %v381
    %v383 = vrot.slane %v378, %v382
    %v401 = vunpack.c.l.b16 %v362
    %v402 = vunpack.c.l.b16 %v363
    %v403 = vunpack.c.l.b16 %v364
    %v404 = vunpack.c.l.b16 %v365
    %v405 = vunpack.c.l.b16 %v366
    %v406 = vunpack.c.l.b16 %v367
    %v407 = vunpack.c.l.b16 %v368
    %v408 = vunpack.c.l.b16 %v369
    %v409 = vunpack.c.l.b16 %v370
    %v410 = vunpack.c.l.b16 %v371
    %v411 = vunpack.c.l.b16 %v372
    %v412 = vunpack.c.l.b16 %v373
    %v413 = vunpack.c.l.b16 %v374
    %v414 = vunpack.c.l.b16 %v375
    %v415 = vunpack.c.l.b16 %v376
    %v416 = vunpack.c.l.b16 %v377
    %v417 = vpack.c.b16 %v402, %v401
    %v418 = vpack.c.b16 %v404, %v403
    %v419 = vpack.c.b16 %v406, %v405
    %v420 = vpack.c.b16 %v408, %v407
    %v421 = vpack.c.b16 %v410, %v409
    %v422 = vpack.c.b16 %v412, %v411
    %v423 = vpack.c.b16 %v414, %v413
    %v424 = vpack.c.b16 %v416, %v415
    %433 = vmatprep.subr.bf16.mxu0 0
    %434 = vmatpush1.bf16.msra.mxu0 %v424
    %435 = vmatprep.subr.bf16.mxu0 0
    %436 = vmatpush1.bf16.msra.mxu0 %v423
    %437 = vmatprep.subr.bf16.mxu0 0
    %438 = vmatpush1.bf16.msra.mxu0 %v422
    %439 = vmatprep.subr.bf16.mxu0 0
    %440 = vmatpush1.bf16.msra.mxu0 %v421
    %441 = vmatprep.subr.bf16.mxu0 0
    %442 = vmatpush1.bf16.msra.mxu0 %v420
    %443 = vmatprep.subr.bf16.mxu0 0
    %444 = vmatpush1.bf16.msra.mxu0 %v419
    %445 = vmatprep.subr.bf16.mxu0 0
    %446 = vmatpush1.bf16.msra.mxu0 %v418
    %447 = vmatprep.subr.bf16.mxu0 0
    %448 = vmatpush1.bf16.msra.mxu0 %v417
    %449 = vmatprep.subr.bf16.mxu0 0
    %450 = vmatpush2.bf16.msra.mxu0 0
    %451 = vmatprep.subr.bf16.mxu0 0
    %452 = vmatpush2.bf16.msra.mxu0 0
    %453 = vmatprep.subr.bf16.mxu0 0
    %454 = vmatpush2.bf16.msra.mxu0 0
    %455 = vmatprep.subr.bf16.mxu0 0
    %456 = vmatpush2.bf16.msra.mxu0 0
    %457 = vmatprep.subr.bf16.mxu0 0
    %458 = vmatpush2.bf16.msra.mxu0 0
    %459 = vmatprep.subr.bf16.mxu0 0
    %460 = vmatpush2.bf16.msra.mxu0 0
    %461 = vmatprep.subr.bf16.mxu0 0
    %462 = vmatpush2.bf16.msra.mxu0 0
    %463 = vmatprep.subr.bf16.mxu0 0
    %464 = vmatpush2.bf16.msra.mxu0 0
    %465 = vmatprep.mubr.bf16.mxu0 0
    %466 = vmatmul.mubr.bf16.gmra.mxu0 %v361
    %v467 = vpop.f32.mrf.mxu0
    %v468 = vadd.f32 %v383, %v467
    %v469 = vpop.f32.mrf.mxu0
    %v470 = vpop.f32.mrf.mxu0
    %v471 = vpop.f32.mrf.mxu0
    %472 = vdwg.mxu0
    %v473 = vpack.c.bf16 %v468, %v468
    %v474 = vtanh.bf16.pop %v473
    %v475 = vunpack.c.l.bf16 %v474
    %v476 = vld [vmem:[%s9] sm:$0x1]
    %v477 = vlaneseq
    %v478 = vshrl.u32 %v477, 7
    %v479 = vsub.s32 0, %v478
    %v480 = vrot.slane %v476, %v479
    %v481 = vmul.f32 %v475, %v480
    %482 = vadd.xlane.f32.xlu0 %v481
    %v483 = vpop.xlane.xlu0 %482
    %v484 = vld [vmem:[%s10] sm:$0x1]
    %v486 = vlaneseq
    %v487 = vshrl.u32 %v486, 7
    %v488 = vsub.s32 0, %v487
    %v489 = vrot.slane %v484, %v488
    %v491 = vadd.f32 %v483, %v489
    %v492 = vld [vmem:[%s9 + $0x1] sm:$0x1]
    %v493 = vlaneseq
    %v494 = vshrl.u32 %v493, 7
    %v495 = vsub.s32 0, %v494
    %v496 = vrot.slane %v492, %v495
    %v497 = vmul.f32 %v475, %v496
    %498 = vadd.xlane.f32.xlu0 %v497
    %v499 = vpop.xlane.xlu0 %498
    %v500 = vadd.f32 %v499, %v489
    %vm501 = vcmask 7168
    %502 = vst.msk [vmem:[%s11] sm:$0xff] %vm501, %v491
    %vm503 = vcmask 15368
    %504 = vst.msk [vmem:[%s11] sm:$0xff] %vm503, %v500
    // Predicated region
    $region58: #{tpu_custom_call.1} parent=1 // pred_check
      _
    $region59: #{tpu_custom_call.1} parent=1 // pred_check_branch
      %506 = sbr.rel (0) target = $region61
    $region60: #{tpu_custom_call.1} parent=1 // pred_region
      _
    $region61: #{tpu_custom_call.1} parent=1 // pred_fallthru
      _
    // Predicated region
    $region62: #{tpu_custom_call.1} parent=1 // pred_check
      _
    $region63: #{tpu_custom_call.1} parent=1 // pred_check_branch
      %508 = sbr.rel (0) target = $region65
    $region64: #{tpu_custom_call.1} parent=1 // pred_region
      _
    $region65: #{tpu_custom_call.1} parent=1 // pred_fallthru
      _
    %509 = vsyncpa [#allocation3], 1
    %510 = vsyncpa [#allocation5], 1

</llo_original>
